<compile_context>
chip_gen: v5e
topology: v5e:2x2
jax: 0.10.0
libtpu: 0.0.40
codegen_flags: <defaults>
</compile_context>

<pallas_src>
import functools

import jax
import jax.numpy as jnp
from jax import lax
from jax.experimental import pallas as pl
from jax.experimental.pallas import tpu as pltpu

_BN_EPS = 1e-5
_VMEM = pl.BlockSpec(memory_space=pltpu.MemorySpace.VMEM)


# ----------------------------------------------------------------------------
# Single-pass fused matmul + BatchNorm(train) + ReLU kernel (whole layer
# resident in VMEM, lane-dense output)
# ----------------------------------------------------------------------------
def _fused_matmul_bn_relu_kernel(w_ref, p_ref, g_ref, b_ref, o_ref, *,
                                 groups, cout, m_real, inv_count):
    """w_ref: [G*Cout, K] bf16 (rows ordered group-major, cout-minor)
    p_ref: [K, Mp] bf16 (Mp = M padded to a 128 multiple, pad columns are 0)
    g_ref/b_ref: [Cout, 1] f32
    o_ref: [G*Cout, Mp] f32
    BN stats pooled per channel over all groups and the m_real real columns.
    """
    # One MXU pass for the whole layer; f32 accumulation.
    y = jnp.dot(w_ref[...], p_ref[...], preferred_element_type=jnp.float32)
    mp = y.shape[1]
    y3 = y.reshape(groups, cout, mp)

    # Per-channel mean: pad columns are exact zeros -> no sum perturbation.
    ch_sum = jnp.sum(jnp.sum(y3, axis=0, keepdims=True), axis=2, keepdims=True)
    mean = ch_sum * inv_count                                   # [1, Cout, 1]

    # Centered variance over real columns only (no E[y^2]-E[y]^2 cancellation).
    valid = lax.broadcasted_iota(jnp.int32, (groups, cout, mp), 2) < m_real
    diff = jnp.where(valid, y3 - mean, 0.0)
    var = jnp.sum(jnp.sum(diff * diff, axis=0, keepdims=True),
                  axis=2, keepdims=True) * inv_count            # [1, Cout, 1]

    # BN folded to one FMA; rsqrt lands on the EUP slot; all math in f32.
    scale = g_ref[...].reshape(1, cout, 1) * lax.rsqrt(var + _BN_EPS)
    shift = b_ref[...].reshape(1, cout, 1) - mean * scale
    z = jnp.maximum(y3 * scale + shift, 0.0)
    o_ref[...] = z.reshape(groups * cout, mp)


def _fused_matmul_bn_relu(wmat, patches, gamma, beta, *, groups, cout, m_real):
    """wmat [G*Cout, K] bf16, patches [K, Mp] bf16 -> [G*Cout, Mp] f32."""
    rows, _ = wmat.shape
    mp = patches.shape[1]
    inv_count = 1.0 / float(groups * m_real)

    kernel = functools.partial(_fused_matmul_bn_relu_kernel,
                               groups=groups, cout=cout, m_real=m_real,
                               inv_count=inv_count)

    # Honest VMEM estimate: operands + output + a few output-sized f32 temps,
    # 2x slack, clamped to leave headroom on v7x (64 MiB physical VMEM).
    need = (wmat.size * 2 + patches.size * 2 + 2 * cout * 4 + 5 * rows * mp * 4)
    vmem_limit = int(min(max(2 * need, 16 << 20), 48 << 20))

    return pl.pallas_call(
        kernel,
        out_shape=jax.ShapeDtypeStruct((rows, mp), jnp.float32),
        in_specs=[_VMEM, _VMEM, _VMEM, _VMEM],
        out_specs=_VMEM,
        compiler_params=pltpu.CompilerParams(vmem_limit_bytes=vmem_limit),
    )(wmat, patches, gamma, beta)


def _pad_lanes(p, multiple=128):
    """Zero-pad the last (lane) dim up to a multiple of 128."""
    m = p.shape[-1]
    mp = -(-m // multiple) * multiple
    if mp != m:
        p = jnp.pad(p, ((0, 0), (0, mp - m)))
    return p


# ----------------------------------------------------------------------------
# Small elementwise kernels (lane-dense layouts)
# ----------------------------------------------------------------------------
def _avgpool_kernel(p_ref, o_ref):
    # window elements on sublanes, all output pixels on lanes.
    o_ref[...] = jnp.mean(p_ref[...], axis=0, keepdims=True)


def _relu_kernel(x_ref, o_ref):
    o_ref[...] = jnp.maximum(x_ref[...], 0.0)


def avgpool_4x4(x_nchw):
    # TODO(synk): could be fused into conv1's normalize epilogue to save one
    # HBM round trip, but it is kept standalone to mirror nn.AvgPool2d.
    n, c, h, w = x_nchw.shape
    ho, wo = h // 4, w // 4
    m = n * c * ho * wo
    p = x_nchw.reshape(n, c, ho, 4, wo, 4).transpose(3, 5, 0, 1, 2, 4).reshape(16, m)
    out = pl.pallas_call(
        _avgpool_kernel,
        out_shape=jax.ShapeDtypeStruct((1, m), jnp.float32),
        in_specs=[_VMEM],
        out_specs=_VMEM,
    )(p)
    return out.reshape(n, c, ho, wo)


def relu_pallas(x_nchw):
    # Note: after up_1 (whose fused kernel already applies ReLU) this is a
    # numerical no-op; kept only because the module has a separate act_1.
    total = x_nchw.size
    lanes = next((ln for ln in (512, 256, 128) if total % ln == 0), x_nchw.shape[-1])
    x2d = x_nchw.reshape(total // lanes, lanes)
    out = pl.pallas_call(
        _relu_kernel,
        out_shape=jax.ShapeDtypeStruct(x2d.shape, jnp.float32),
        in_specs=[_VMEM],
        out_specs=_VMEM,
    )(x2d)
    return out.reshape(x_nchw.shape)


# ----------------------------------------------------------------------------
# Layer wrappers (Conv2D / Deconv2D with norm='batch', activation='relu',
# bias=False -- as constructed inside FeedbackBlock)
# ----------------------------------------------------------------------------
class Conv2DPallas:
    def __init__(self, key, cin, cout, k, stride, pad):
        self.k, self.stride, self.pad = k, stride, pad
        self.cin, self.cout = cin, cout
        self.w = 0.05 * jax.random.normal(key, (cout, cin, k, k), jnp.float32)
        self.gamma = jnp.ones((cout, 1), jnp.float32)
        self.beta = jnp.zeros((cout, 1), jnp.float32)
        # [Cout, K] with K ordered (ci, kh, kw); hoisted, bf16 MXU operand.
        self.wmat = self.w.reshape(cout, cin * k * k).astype(jnp.bfloat16)

    def __call__(self, x_nchw):
        n, cin, h, w = x_nchw.shape
        k, s, p = self.k, self.stride, self.pad
        ho = (h + 2 * p - k) // s + 1
        wo = (w + 2 * p - k) // s + 1
        m = n * ho * wo
        # TODO(synk): patches still materialized with XLA slices; an in-kernel
        # DMA gather (memory_space=pl.ANY + scalar-prefetched offsets) would
        # avoid the im2col HBM expansion entirely.
        xp = jnp.pad(x_nchw, ((0, 0), (0, 0), (p, p), (p, p)))
        cols = [xp[:, :, i:i + s * ho:s, j:j + s * wo:s]
                for i in range(k) for j in range(k)]
        pt = jnp.stack(cols, axis=2)                               # [n,cin,k*k,ho,wo]
        pt = pt.transpose(1, 2, 0, 3, 4).reshape(cin * k * k, m)   # [K, M]
        patches = _pad_lanes(pt.astype(jnp.bfloat16))              # [K, Mp]
        out = _fused_matmul_bn_relu(self.wmat, patches, self.gamma, self.beta,
                                    groups=1, cout=self.cout, m_real=m)
        out = out[:, :m].reshape(self.cout, n, ho, wo)
        return out.transpose(1, 0, 2, 3)


class Deconv2DPallas:
    """ConvTranspose2d via sub-pixel (stride-phase) decomposition.

    All s*s output phases are stacked on the matmul output-row axis and share
    one padded-tap patch tensor, so the whole layer is a single
    [s*s*Cout, K'] @ [K', M] matmul (no zero-insertion FLOP waste, no
    per-phase patch duplication, 16x MXU row utilization).
    """

    def __init__(self, key, cin, cout, k, stride, pad):
        self.k, self.stride, self.pad = k, stride, pad
        self.cin, self.cout = cin, cout
        # PyTorch ConvTranspose2d weight layout: (Cin, Cout, kH, kW)
        self.w = 0.05 * jax.random.normal(key, (cin, cout, k, k), jnp.float32)
        self.gamma = jnp.ones((cout, 1), jnp.float32)
        self.beta = jnp.zeros((cout, 1), jnp.float32)

        s = stride
        t = -(-k // s)                                 # taps per dim per phase
        c_min, c_max = pad // s, (s - 1 + pad) // s
        self.off_lo = c_min - (t - 1)                  # shared tap-offset range
        self.off_hi = c_max
        tdim = self.off_hi - self.off_lo + 1
        self.tdim = tdim

        w_oihw = jnp.transpose(self.w, (1, 0, 2, 3))   # (Cout, Cin, k, k)
        blocks = []
        for phh in range(s):
            r_h, c_h = (phh + pad) % s, (phh + pad) // s
            for phw in range(s):
                r_w, c_w = (phw + pad) % s, (phw + pad) // s
                sub = jnp.zeros((cout, cin, tdim, tdim), jnp.float32)
                for ih, dh in enumerate(range(self.off_lo, self.off_hi + 1)):
                    mh = c_h - dh
                    kh = r_h + mh * s
                    if not (0 <= mh < t and kh < k):
                        continue
                    for iw, dw in enumerate(range(self.off_lo, self.off_hi + 1)):
                        mw = c_w - dw
                        kw = r_w + mw * s
                        if not (0 <= mw < t and kw < k):
                            continue
                        sub = sub.at[:, :, ih, iw].set(w_oihw[:, :, kh, kw])
                blocks.append(sub.reshape(cout, cin * tdim * tdim))
        # [s*s*Cout, K'] phase-stacked weights (rows: phase-major, cout-minor),
        # hoisted out of __call__, bf16.
        self.wmat = jnp.concatenate(blocks, axis=0).astype(jnp.bfloat16)

    def __call__(self, x_nchw):
        n, cin, h, w = x_nchw.shape
        k, s, p, tdim = self.k, self.stride, self.pad, self.tdim
        hout = (h - 1) * s - 2 * p + k
        wout = (w - 1) * s - 2 * p + k
        # TODO(synk): output_padding and Hout % stride != 0 are not supported.
        assert hout % s == 0 and wout % s == 0
        qh, qw = hout // s, wout // s
        m = n * qh * qw

        pad_lo = max(0, -self.off_lo)
        pad_hi_h = max(0, qh + self.off_hi - h)
        pad_hi_w = max(0, qw + self.off_hi - w)
        xp = jnp.pad(x_nchw, ((0, 0), (0, 0), (pad_lo, pad_hi_h), (pad_lo, pad_hi_w)))

        # Shared padded-tap patches: one (t+1)^2-tap tensor for ALL phases.
        taps = []
        for dh in range(self.off_lo, self.off_hi + 1):
            h0 = pad_lo + dh
            for dw in range(self.off_lo, self.off_hi + 1):
                w0 = pad_lo + dw
                taps.append(xp[:, :, h0:h0 + qh, w0:w0 + qw])
        pt = jnp.stack(taps, axis=2)                               # [n,cin,T*T,qh,qw]
        pt = pt.transpose(1, 2, 0, 3, 4).reshape(cin * tdim * tdim, m)
        patches = _pad_lanes(pt.astype(jnp.bfloat16))              # [K', Mp]

        out = _fused_matmul_bn_relu(self.wmat, patches, self.gamma, self.beta,
                                    groups=s * s, cout=self.cout, m_real=m)
        out = out[:, :m].reshape(s, s, self.cout, n, qh, qw)
        out = out.transpose(3, 2, 4, 0, 5, 1).reshape(n, self.cout, hout, wout)
        return out


# ----------------------------------------------------------------------------
# FeedbackBlock
# ----------------------------------------------------------------------------
class FeedbackBlock:
    def __init__(self, in_filter, num_filter, kernel_size=8, stride=4, padding=2):
        keys = jax.random.split(jax.random.PRNGKey(42), 6)
        self.down1 = Conv2DPallas(keys[0], in_filter, num_filter, kernel_size, stride, padding)
        self.conv1 = Conv2DPallas(keys[1], in_filter, num_filter, 1, 1, 0)
        self.avgpool_1 = avgpool_4x4
        self.up_1 = Deconv2DPallas(keys[2], num_filter, num_filter, 8, 4, 2)
        self.act_1 = relu_pallas
        self.up_conv1 = Deconv2DPallas(keys[3], num_filter, num_filter, kernel_size, stride, padding)
        self.up_conv2 = Conv2DPallas(keys[4], num_filter, num_filter, kernel_size, stride, padding)
        self.up_conv3 = Deconv2DPallas(keys[5], num_filter, num_filter, kernel_size, stride, padding)

    def forward(self, l, d, e):
        # TODO(synk): the reference FeedbackBlock.forward returns None (no dataflow
        # is wired up); submodule Pallas kernels are exercised individually in __main__.
        return None


# ----------------------------------------------------------------------------
# Pure-JAX references for correctness checks
# ----------------------------------------------------------------------------
def _bn_relu_ref(y, gamma, beta):
    mean = jnp.mean(y, axis=(0, 2, 3), keepdims=True)
    var = jnp.mean(jnp.square(y - mean), axis=(0, 2, 3), keepdims=True)
    yn = (y - mean) * lax.rsqrt(var + _BN_EPS)
    yn = yn * gamma.reshape(1, -1, 1, 1) + beta.reshape(1, -1, 1, 1)
    return jnp.maximum(yn, 0.0)


def _conv2d_ref(layer, x):
    y = lax.conv_general_dilated(
        x, layer.w, (layer.stride, layer.stride),
        [(layer.pad, layer.pad)] * 2,
        dimension_numbers=("NCHW", "OIHW", "NCHW"),
        precision=lax.Precision.HIGHEST)
    return _bn_relu_ref(y, layer.gamma, layer.beta)


def _deconv2d_ref(layer, x):
    k, s, p = layer.k, layer.stride, layer.pad
    y = lax.conv_general_dilated(
        x, jnp.flip(layer.w, axis=(2, 3)), (1, 1),
        [(k - 1 - p, k - 1 - p)] * 2,
        lhs_dilation=(s, s),
        dimension_numbers=("NCHW", "IOHW", "NCHW"),
        precision=lax.Precision.HIGHEST)
    return _bn_relu_ref(y, layer.gamma, layer.beta)


def _check(name, got, want, tol=8e-2):
    err = float(jnp.max(jnp.abs(got - want)))
    assert err < tol, f"{name}: max abs err {err} >= {tol}"


if __name__ == "__main__":
    N, CIN, CNUM, H, W = 2, 4, 8, 16, 16
    key = jax.random.PRNGKey(0)
    kl, kd, ke = jax.random.split(key, 3)
    l = jax.random.normal(kl, (N, CIN, H, W), jnp.float32)
    d = jax.random.normal(kd, (N, CIN, H, W), jnp.float32)
    e = jax.random.normal(ke, (N, CIN, H, W), jnp.float32)

    fb = FeedbackBlock(CIN, CNUM)

    # Exercise every submodule's Pallas kernel once.
    x_down = fb.down1(l)                    # (2, 8, 4, 4)
    x_conv = fb.conv1(d)                    # (2, 8, 16, 16)
    x_pool = fb.avgpool_1(x_conv)           # (2, 8, 4, 4)
    x_up = fb.up_1(x_down)                  # (2, 8, 16, 16)
    x_act = fb.act_1(x_up)                  # (2, 8, 16, 16)  (no-op after up_1)
    x_uc1 = fb.up_conv1(x_pool)             # (2, 8, 16, 16)
    x_uc2 = fb.up_conv2(x_uc1)              # (2, 8, 4, 4)
    x_uc3 = fb.up_conv3(x_uc2)              # (2, 8, 16, 16)
    jax.block_until_ready((x_down, x_conv, x_pool, x_up, x_act, x_uc1, x_uc2, x_uc3))

    assert x_down.shape == (N, CNUM, 4, 4)
    assert x_conv.shape == (N, CNUM, H, W)
    assert x_pool.shape == (N, CNUM, 4, 4)
    assert x_up.shape == (N, CNUM, H, W)
    assert x_act.shape == (N, CNUM, H, W)
    assert x_uc1.shape == (N, CNUM, H, W)
    assert x_uc2.shape == (N, CNUM, 4, 4)
    assert x_uc3.shape == (N, CNUM, H, W)

    # Numerical checks against pure-JAX references (tolerance covers the bf16
    # MXU operands; stats/epilogue are f32 with centered masked variance).
    _check("down1", x_down, _conv2d_ref(fb.down1, l))
    _check("conv1", x_conv, _conv2d_ref(fb.conv1, d))
    _check("avgpool_1", x_pool,
           x_conv.reshape(N, CNUM, 4, 4, 4, 4).mean(axis=(3, 5)), tol=1e-5)
    _check("up_1", x_up, _deconv2d_ref(fb.up_1, x_down))
    _check("act_1", x_act, jnp.maximum(x_up, 0.0), tol=1e-6)
    _check("up_conv1", x_uc1, _deconv2d_ref(fb.up_conv1, x_pool))
    _check("up_conv2", x_uc2, _conv2d_ref(fb.up_conv2, x_uc1))
    _check("up_conv3", x_uc3, _deconv2d_ref(fb.up_conv3, x_uc2))

    # Forward semantics of the reference module: returns None.
    assert fb.forward(l, d, e) is None

    print("KERNEL_OK")
</pallas_src>

<mosaic_0001>
module attributes {stable_mosaic.version = 11 : i64} {
  func.func @_fused_matmul_bn_relu_kernel(%arg0: memref<8x256xbf16, #tpu.memory_space<vmem>>, %arg1: memref<256x128xbf16, #tpu.memory_space<vmem>>, %arg2: memref<8x1xf32, #tpu.memory_space<vmem>>, %arg3: memref<8x1xf32, #tpu.memory_space<vmem>>, %arg4: memref<8x128xf32, #tpu.memory_space<vmem>>) attributes {dimension_semantics = [], scalar_prefetch = 0 : i64, scratch_operands = 0 : i64, tpu.core_type = #tpu.core_type<tc>} {
    %c0 = arith.constant 0 : index
    %c0_0 = arith.constant 0 : index
    %0 = vector.load %arg0[%c0, %c0_0] : memref<8x256xbf16, #tpu.memory_space<vmem>>, vector<8x256xbf16>
    %c0_1 = arith.constant 0 : index
    %c0_2 = arith.constant 0 : index
    %1 = vector.load %arg1[%c0_1, %c0_2] : memref<256x128xbf16, #tpu.memory_space<vmem>>, vector<256x128xbf16>
    %cst = arith.constant dense<0.000000e+00> : vector<8x128xf32>
    %2 = tpu.matmul %0, %1, %cst {dimension_numbers = #tpu.dot_dimension_numbers<[1], [0], [0], [1], [0, 0, 1, 1], [], []>} : vector<8x256xbf16>, vector<256x128xbf16>, vector<8x128xf32> -> vector<8x128xf32>
    %3 = vector.shape_cast %2 : vector<8x128xf32> to vector<1x8x128xf32>
    %cst_3 = arith.constant dense<0.000000e+00> : vector<8x128xf32>
    %4 = vector.multi_reduction <add>, %3, %cst_3 [0] : vector<1x8x128xf32> to vector<8x128xf32>
    %5 = vector.shape_cast %4 : vector<8x128xf32> to vector<1x8x128xf32>
    %cst_4 = arith.constant dense<0.000000e+00> : vector<1x8xf32>
    %6 = vector.multi_reduction <add>, %5, %cst_4 [2] : vector<1x8x128xf32> to vector<1x8xf32>
    %7 = vector.shape_cast %6 : vector<1x8xf32> to vector<1x8x1xf32>
    %cst_5 = arith.constant 3.125000e-02 : f32
    %8 = vector.broadcast %cst_5 : f32 to vector<1x8x1xf32>
    %9 = arith.mulf %7, %8 : vector<1x8x1xf32>
    %10 = tpu.iota {dimensions = array<i32: 2>} : vector<1x8x128xi32>
    %c32_i32 = arith.constant 32 : i32
    %11 = vector.broadcast %c32_i32 : i32 to vector<1x8x128xi32>
    %12 = arith.cmpi slt, %10, %11 : vector<1x8x128xi32>
    %13 = vector.broadcast %9 : vector<1x8x1xf32> to vector<1x8x128xf32>
    %14 = arith.subf %3, %13 : vector<1x8x128xf32>
    %cst_6 = arith.constant 0.000000e+00 : f32
    %15 = vector.broadcast %cst_6 : f32 to vector<1x8x128xf32>
    %16 = arith.select %12, %14, %15 : vector<1x8x128xi1>, vector<1x8x128xf32>
    %17 = arith.mulf %16, %16 : vector<1x8x128xf32>
    %cst_7 = arith.constant dense<0.000000e+00> : vector<8x128xf32>
    %18 = vector.multi_reduction <add>, %17, %cst_7 [0] : vector<1x8x128xf32> to vector<8x128xf32>
    %19 = vector.shape_cast %18 : vector<8x128xf32> to vector<1x8x128xf32>
    %cst_8 = arith.constant dense<0.000000e+00> : vector<1x8xf32>
    %20 = vector.multi_reduction <add>, %19, %cst_8 [2] : vector<1x8x128xf32> to vector<1x8xf32>
    %21 = vector.shape_cast %20 : vector<1x8xf32> to vector<1x8x1xf32>
    %cst_9 = arith.constant 3.125000e-02 : f32
    %22 = vector.broadcast %cst_9 : f32 to vector<1x8x1xf32>
    %23 = arith.mulf %21, %22 : vector<1x8x1xf32>
    %c0_10 = arith.constant 0 : index
    %c0_11 = arith.constant 0 : index
    %24 = vector.load %arg2[%c0_10, %c0_11] : memref<8x1xf32, #tpu.memory_space<vmem>>, vector<8x1xf32>
    %25 = vector.shape_cast %24 : vector<8x1xf32> to vector<1x8x1xf32>
    %cst_12 = arith.constant 9.99999974E-6 : f32
    %26 = vector.broadcast %cst_12 : f32 to vector<1x8x1xf32>
    %27 = arith.addf %23, %26 : vector<1x8x1xf32>
    %28 = math.rsqrt %27 : vector<1x8x1xf32>
    %29 = arith.mulf %25, %28 : vector<1x8x1xf32>
    %c0_13 = arith.constant 0 : index
    %c0_14 = arith.constant 0 : index
    %30 = vector.load %arg3[%c0_13, %c0_14] : memref<8x1xf32, #tpu.memory_space<vmem>>, vector<8x1xf32>
    %31 = vector.shape_cast %30 : vector<8x1xf32> to vector<1x8x1xf32>
    %32 = arith.mulf %9, %29 : vector<1x8x1xf32>
    %33 = arith.subf %31, %32 : vector<1x8x1xf32>
    %34 = vector.broadcast %29 : vector<1x8x1xf32> to vector<1x8x128xf32>
    %35 = arith.mulf %3, %34 : vector<1x8x128xf32>
    %36 = vector.broadcast %33 : vector<1x8x1xf32> to vector<1x8x128xf32>
    %37 = arith.addf %35, %36 : vector<1x8x128xf32>
    %cst_15 = arith.constant 0.000000e+00 : f32
    %38 = vector.broadcast %cst_15 : f32 to vector<1x8x128xf32>
    %39 = arith.maximumf %37, %38 : vector<1x8x128xf32>
    %40 = vector.shape_cast %39 : vector<1x8x128xf32> to vector<8x128xf32>
    %c0_16 = arith.constant 0 : index
    %c0_17 = arith.constant 0 : index
    %41 = vector.load %arg4[%c0_16, %c0_17] : memref<8x128xf32, #tpu.memory_space<vmem>>, vector<8x128xf32>
    tpu.vector_store %arg4[%c0_16, %c0_17], %40 {strides = array<i32>} : memref<8x128xf32, #tpu.memory_space<vmem>>, vector<8x128xf32>,
    return
  }
}

</mosaic_0001>

<llo_original>
// kernel: tpu_custom_call.1
$region0: #{tpu_custom_call.1}
  #allocation0 [shape = 'u32[]', space=smem, size = 0x4, offset = 0x4, fixed_abs, tag = 'smem constant byte address 0x4 - core index']
  #allocation1 [shape = 'u32[72,128]{1,0:T(1,128)}', space=vmem, size = 0x9000, scoped, tag = 'internal scratch']
  %s0 = inlined_call_operand.vmem [shape: bf16[8,256], index: 0, kind: input, shape index: {}]
  %s1 = inlined_call_operand.hbm [shape: bf16[256,128], index: 1, kind: input, shape index: {}]
  %s2 = inlined_call_operand.vmem [shape: f32[8,1], index: 2, kind: input, shape index: {}]
  %s3 = inlined_call_operand.vmem [shape: f32[8,1], index: 3, kind: input, shape index: {}]
  %s4 = inlined_call_operand.hbm [shape: f32[8,128], index: 4, kind: output, shape index: {}]
  %s5 = sld [smem:[#allocation0]]
  $region30: #{tpu_custom_call.1} parent=0
    _
  %s7 = ssub.s32 1, %s5
  %s8 = scalar_select 0, %s7, %s5
  $region1: #{tpu_custom_call.1} parent=0
    #allocation2 [shape = 'u8[65536]{0}', space=vmem, size = 0x10000, scoped, tag = 'input window, operand 1, single buffered']
    #allocation3 [shape = 's32[1]{0}', space=sflag, size = 0x4, scoped, tag = 'scoped memory for tpu_custom_call.1']
    #allocation4 [shape = 's32[1]{0}', space=sflag, size = 0x4, scoped, tag = 'scoped memory for tpu_custom_call.1']
    #allocation5 [shape = 'u8[4096]{0}', space=vmem, size = 0x1000, scoped, tag = 'output window, operand 0, single buffered']
    %9 = vsyncpa [#allocation3], 0
    %10 = vsyncpa [#allocation4], 0
    // Predicated region
    $region2: #{tpu_custom_call.1} parent=1 // pred_check
      _
    $region3: #{tpu_custom_call.1} parent=1 // pred_check_branch
      %12 = sbr.rel (0) target = $region5
    $region4: #{tpu_custom_call.1} parent=1 // pred_region
      _
    $region5: #{tpu_custom_call.1} parent=1 // pred_fallthru
      _
    // Predicated region
    $region6: #{tpu_custom_call.1} parent=1 // pred_check
      _
    $region7: #{tpu_custom_call.1} parent=1 // pred_check_branch
      %14 = sbr.rel (0) target = $region9
    $region8: #{tpu_custom_call.1} parent=1 // pred_region
      %16 = vsyncadd [#allocation3], 0
      %s17 = sshll.u32 %s1, 4
      %s18 = int_to_ptr.hbm [resolvable:$true] %s17
      %s19 = sshll.u32 [#allocation2], 4
      %s20 = int_to_ptr.vmem [resolvable:$true] %s19
      %25 = dma.hbm_to_vmem [thread:$0]  %s18, 2048, %s20, [#allocation3], 64, 64, 4
    $region9: #{tpu_custom_call.1} parent=1 // pred_fallthru
      _
    // Predicated region
    $region10: #{tpu_custom_call.1} parent=1 // pred_check
      _
    $region11: #{tpu_custom_call.1} parent=1 // pred_check_branch
      %27 = sbr.rel (0) target = $region13
    $region12: #{tpu_custom_call.1} parent=1 // pred_region
      _
    $region13: #{tpu_custom_call.1} parent=1 // pred_fallthru
      _
    // Predicated region
    $region14: #{tpu_custom_call.1} parent=1 // pred_check
      _
    $region15: #{tpu_custom_call.1} parent=1 // pred_check_branch
      %29 = sbr.rel (0) target = $region17
    $region16: #{tpu_custom_call.1} parent=1 // pred_region
      _
    $region17: #{tpu_custom_call.1} parent=1 // pred_fallthru
      _
    // Predicated region
    $region18: #{tpu_custom_call.1} parent=1 // pred_check
      _
    $region19: #{tpu_custom_call.1} parent=1 // pred_check_branch
      %31 = sbr.rel (0) target = $region21
    $region20: #{tpu_custom_call.1} parent=1 // pred_region
      %33 = dma.done [#allocation3], 2048
    $region21: #{tpu_custom_call.1} parent=1 // pred_fallthru
      _
    %v34 = vld [vmem:[%s0] sm:$0xff]
    %v35 = vld [vmem:[#allocation2] sm:$0xf]
    %v36 = vld [vmem:[#allocation2 + $0x4] sm:$0xf]
    %v37 = vld [vmem:[#allocation2 + $0x8] sm:$0xf]
    %v38 = vld [vmem:[#allocation2 + $0xc] sm:$0xf]
    %v39 = vld [vmem:[#allocation2 + $0x10] sm:$0xf]
    %v40 = vld [vmem:[#allocation2 + $0x14] sm:$0xf]
    %v41 = vld [vmem:[#allocation2 + $0x18] sm:$0xf]
    %v42 = vld [vmem:[#allocation2 + $0x1c] sm:$0xf]
    %v43 = vld [vmem:[#allocation2 + $0x20] sm:$0xf]
    %v44 = vld [vmem:[#allocation2 + $0x24] sm:$0xf]
    %v45 = vld [vmem:[#allocation2 + $0x28] sm:$0xf]
    %v46 = vld [vmem:[#allocation2 + $0x2c] sm:$0xf]
    %v47 = vld [vmem:[#allocation2 + $0x30] sm:$0xf]
    %v48 = vld [vmem:[#allocation2 + $0x34] sm:$0xf]
    %v49 = vld [vmem:[#allocation2 + $0x38] sm:$0xf]
    %v50 = vld [vmem:[#allocation2 + $0x3c] sm:$0xf]
    %v51 = vld [vmem:[#allocation2 + $0x40] sm:$0xf]
    %v52 = vld [vmem:[#allocation2 + $0x44] sm:$0xf]
    %v53 = vld [vmem:[#allocation2 + $0x48] sm:$0xf]
    %v54 = vld [vmem:[#allocation2 + $0x4c] sm:$0xf]
    %v55 = vld [vmem:[#allocation2 + $0x50] sm:$0xf]
    %v56 = vld [vmem:[#allocation2 + $0x54] sm:$0xf]
    %v57 = vld [vmem:[#allocation2 + $0x58] sm:$0xf]
    %v58 = vld [vmem:[#allocation2 + $0x5c] sm:$0xf]
    %v59 = vld [vmem:[#allocation2 + $0x60] sm:$0xf]
    %v60 = vld [vmem:[#allocation2 + $0x64] sm:$0xf]
    %v61 = vld [vmem:[#allocation2 + $0x68] sm:$0xf]
    %v62 = vld [vmem:[#allocation2 + $0x6c] sm:$0xf]
    %v63 = vld [vmem:[#allocation2 + $0x70] sm:$0xf]
    %v64 = vld [vmem:[#allocation2 + $0x74] sm:$0xf]
    %v65 = vld [vmem:[#allocation2 + $0x78] sm:$0xf]
    %v66 = vld [vmem:[#allocation2 + $0x7c] sm:$0xf]
    %v68 = vunpack.c.l.b16 %v34
    %v69 = vunpack.c.h.b16 %v34
    %v70 = vpack.c.b16 %v68, %v68
    %v71 = vpack.c.b16 %v69, %v69
    %v106 = vunpack.c.l.b16 %v35
    %v107 = vunpack.c.l.b16 %v36
    %v108 = vunpack.c.l.b16 %v37
    %v109 = vunpack.c.l.b16 %v38
    %v110 = vunpack.c.l.b16 %v39
    %v111 = vunpack.c.l.b16 %v40
    %v112 = vunpack.c.l.b16 %v41
    %v113 = vunpack.c.l.b16 %v42
    %v114 = vunpack.c.l.b16 %v43
    %v115 = vunpack.c.l.b16 %v44
    %v116 = vunpack.c.l.b16 %v45
    %v117 = vunpack.c.l.b16 %v46
    %v118 = vunpack.c.l.b16 %v47
    %v119 = vunpack.c.l.b16 %v48
    %v120 = vunpack.c.l.b16 %v49
    %v121 = vunpack.c.l.b16 %v50
    %v122 = vunpack.c.l.b16 %v51
    %v123 = vunpack.c.l.b16 %v52
    %v124 = vunpack.c.l.b16 %v53
    %v125 = vunpack.c.l.b16 %v54
    %v126 = vunpack.c.l.b16 %v55
    %v127 = vunpack.c.l.b16 %v56
    %v128 = vunpack.c.l.b16 %v57
    %v129 = vunpack.c.l.b16 %v58
    %v130 = vunpack.c.l.b16 %v59
    %v131 = vunpack.c.l.b16 %v60
    %v132 = vunpack.c.l.b16 %v61
    %v133 = vunpack.c.l.b16 %v62
    %v134 = vunpack.c.l.b16 %v63
    %v135 = vunpack.c.l.b16 %v64
    %v136 = vunpack.c.l.b16 %v65
    %v137 = vunpack.c.l.b16 %v66
    %v138 = vpack.c.b16 %v107, %v106
    %v139 = vpack.c.b16 %v109, %v108
    %v140 = vpack.c.b16 %v111, %v110
    %v141 = vpack.c.b16 %v113, %v112
    %v142 = vpack.c.b16 %v115, %v114
    %v143 = vpack.c.b16 %v117, %v116
    %v144 = vpack.c.b16 %v119, %v118
    %v145 = vpack.c.b16 %v121, %v120
    %v146 = vpack.c.b16 %v123, %v122
    %v147 = vpack.c.b16 %v125, %v124
    %v148 = vpack.c.b16 %v127, %v126
    %v149 = vpack.c.b16 %v129, %v128
    %v150 = vpack.c.b16 %v131, %v130
    %v151 = vpack.c.b16 %v133, %v132
    %v152 = vpack.c.b16 %v135, %v134
    %v153 = vpack.c.b16 %v137, %v136
    %170 = vmatpush.bf16.msra.mxu0 %v145
    %171 = vmatpush.bf16.msra.mxu0 %v144
    %172 = vmatpush.bf16.msra.mxu0 %v143
    %173 = vmatpush.bf16.msra.mxu0 %v142
    %174 = vmatpush.bf16.msra.mxu0 %v141
    %175 = vmatpush.bf16.msra.mxu0 %v140
    %176 = vmatpush.bf16.msra.mxu0 %v139
    %177 = vmatpush.bf16.msra.mxu0 %v138
    %178 = vmatmul.bf16.gmra.mxu0 %v70
    %v179 = vpop.f32.mrf.mxu0
    %v180 = vadd.f32 0.0, %v179
    %v181 = vpop.f32.mrf.mxu0
    %182 = vdwg.mxu0
    %183 = vmatpush.bf16.msra.mxu0 %v153
    %184 = vmatpush.bf16.msra.mxu0 %v152
    %185 = vmatpush.bf16.msra.mxu0 %v151
    %186 = vmatpush.bf16.msra.mxu0 %v150
    %187 = vmatpush.bf16.msra.mxu0 %v149
    %188 = vmatpush.bf16.msra.mxu0 %v148
    %189 = vmatpush.bf16.msra.mxu0 %v147
    %190 = vmatpush.bf16.msra.mxu0 %v146
    %191 = vmatmul.bf16.gmra.mxu0 %v71
    %v192 = vpop.f32.mrf.mxu0
    %v193 = vadd.f32 %v180, %v192
    %v194 = vpop.f32.mrf.mxu0
    %195 = vdwg.mxu0
    %v196 = vadd.f32 %v193, 0.0
    %197 = vadd.xlane.f32.xlu0 %v196
    %v198 = vpop.xlane.xlu0 %197
    %v199 = vmul.f32 %v198, 0.03125
    %v200 = vlaneseq
    %v201 = vand.u32 %v200, 127
    %vm202 = vcmp.lt.s32.totalorder %v201, 32
    %v203 = vsub.f32 %v193, %v199
    %v204 = vsel %vm202, %v203, 0.0
    %v205 = vmul.f32 %v204, %v204
    %v206 = vadd.f32 %v205, 0.0
    %207 = vadd.xlane.f32.xlu0 %v206
    %v208 = vpop.xlane.xlu0 %207
    %v209 = vmul.f32 %v208, 0.03125
    %v210 = vld [vmem:[%s2] sm:$0xff]
    %v211 = vadd.f32 %v209, 1e-05
    %v212 = vrsqrt.pop %v211
    %v213 = vmul.f32 %v212, %v211
    %v214 = vmul.f32 %v213, %v212
    %v215 = vmul.f32 0.5, %v214
    %v216 = vsub.f32 1.5, %v215
    %v217 = vmul.f32 %v212, %v216
    %vm218 = vweird.f32 %v211
    %vm219 = vweird.f32 %v212
    %vm220 = vmor %vm218, %vm219
    %v221 = vsel %vm220, %v212, %v217
    %v222 = vmul.f32 %v210, %v221
    %v223 = vld [vmem:[%s3] sm:$0xff]
    %v224 = vmul.f32 %v199, %v222
    %v225 = vsub.f32 %v223, %v224
    %227 = vset.pattern.permute.xlu0 0
    %228 = vperm.xlu0 %227, %v222
    %v229 = vpop.permute.xlu0 %228
    %v231 = vmul.f32 %v193, %v229
    %233 = vset.pattern.permute.xlu0 0
    %234 = vperm.xlu0 %233, %v225
    %v235 = vpop.permute.xlu0 %234
    %v237 = vadd.f32 %v231, %v235
    %v238 = vmax.f32 %v237, 0.0
    %239 = vst [vmem:[#allocation5] sm:$0xff] %v238
    // Predicated region
    $region22: #{tpu_custom_call.1} parent=1 // pred_check
      _
    $region23: #{tpu_custom_call.1} parent=1 // pred_check_branch
      %241 = sbr.rel (0) target = $region25
    $region24: #{tpu_custom_call.1} parent=1 // pred_region
      %243 = vsyncadd [#allocation4], 0
      %s245 = sshll.u32 [#allocation5], 4
      %s246 = int_to_ptr.vmem [resolvable:$true] %s245
      %s247 = sshll.u32 %s4, 4
      %s248 = int_to_ptr.hbm [resolvable:$true] %s247
      %250 = dma.vmem_to_hbm [thread:$0]  %s246, 128, %s248, [#allocation4]
    $region25: #{tpu_custom_call.1} parent=1 // pred_fallthru
      _
    // Predicated region
    $region26: #{tpu_custom_call.1} parent=1 // pred_check
      _
    $region27: #{tpu_custom_call.1} parent=1 // pred_check_branch
      %252 = sbr.rel (0) target = $region29
    $region28: #{tpu_custom_call.1} parent=1 // pred_region
      %254 = dma.done [#allocation4], 128
    $region29: #{tpu_custom_call.1} parent=1 // pred_fallthru
      _
    %255 = vsyncpa [#allocation3], 1
    %256 = vsyncpa [#allocation4], 1

</llo_original>
